<compile_context>
chip_gen: v7x
topology: tpu7x:2x2x1
jax: 0.10.0
libtpu: 0.0.40
codegen_flags: <defaults>
</compile_context>

<pallas_src>
import functools

import jax
import jax.numpy as jnp
from jax.experimental import pallas as pl
from jax.experimental.pallas import tpu as pltpu


# ---------------------------------------------------------------------------
# Generation-aware VMEM budgeting
# ---------------------------------------------------------------------------

def _vmem_budget_bytes():
    """~Half of physical VMEM (128 MiB v5e/v6e, 64 MiB per TC on v7x), leaving
    headroom for Mosaic's own scratch.  Falls back to the smallest generation
    (v7x) if the trace-time query is unavailable."""
    try:
        phys = int(pltpu.get_tpu_info().vmem_capacity_bytes)
    except Exception:
        phys = 64 * 1024 * 1024
    return phys // 2


def _pick_s_tile(S, C, itemsize, max_tile_bytes):
    """Largest lane-dense tile (multiple of 128, or the full S) whose
    (1, C, tile) block stays under max_tile_bytes.  Prefers exact divisors of
    S so every store is a full unmasked tile; if S is not a multiple of 128
    and the full block is over budget, returns a multiple-of-128 tile and the
    caller masks the padded tail lanes (cdiv grid)."""
    if C * S * itemsize <= max_tile_bytes or S <= 128:
        return S
    cap_lanes = max(128, (max_tile_bytes // (C * itemsize)) // 128 * 128)
    cap_lanes = min(cap_lanes, ((S + 127) // 128) * 128)
    if S % 128 == 0:
        t = cap_lanes
        while t >= 128:
            if S % t == 0:
                return t
            t -= 128
        return 128
    return cap_lanes


# ---------------------------------------------------------------------------
# Fused single-pass kernel (primary path): 1 HBM read + 1 HBM write of x.
# ---------------------------------------------------------------------------

def _se_fused_kernel(x_ref, w1_ref, b1_ref, w2t_ref, b2_ref, o_ref, *, inv_s):
    """x_ref/o_ref: (1, C, S).  w1: (C, R), b1: (1, R), w2t: (C, R), b2: (C, 1).

    The excitation MLP is tiny, so it is done with broadcast-multiply +
    reduce on the VPU/XLU; operands are pre-arranged so the pooled vector and
    the final scale keep C on the sublane axis (no large relayouts, and the
    (1, C, 1) scale broadcasts directly over the lane axis of x)."""
    x = x_ref[...].astype(jnp.float32)                               # (1, C, S)
    pooled = jnp.sum(x, axis=-1, keepdims=True) * inv_s              # (1, C, 1)
    h = jnp.sum(pooled * w1_ref[...][None], axis=1) + b1_ref[...]    # (1, R)
    h = h * jax.nn.sigmoid(h)                                        # Swish
    pre = jnp.sum(h[:, None, :] * w2t_ref[...][None], axis=-1,
                  keepdims=True) + b2_ref[...][None]                 # (1, C, 1)
    scale = jax.nn.sigmoid(pre)
    o_ref[...] = (x * scale).astype(o_ref.dtype)


# ---------------------------------------------------------------------------
# Two-pass fallback kernels (only when (1, C, S) blocks don't fit VMEM)
# ---------------------------------------------------------------------------

def _pool_mlp_kernel(x_ref, w1_ref, b1_ref, w2t_ref, b2_ref, scale_ref, acc_ref,
                     *, inv_s, s_total, s_tile, mask_tail):
    """Pass 1: stream lane-dense S tiles, accumulate into a lane-dense f32
    VMEM scratch (pure VPU adds in steady state).  The single cross-lane
    reduce and the tiny excitation MLP run once in the epilogue, emitting the
    (1, C, 1) sigmoid scale directly as this pass's output."""
    s_idx = pl.program_id(1)

    @pl.when(s_idx == 0)
    def _():
        acc_ref[...] = jnp.zeros_like(acc_ref)

    x = x_ref[...].astype(jnp.float32)
    if mask_tail:  # static flag: only when s_tile does not divide S
        lane = jax.lax.broadcasted_iota(jnp.int32, x.shape, dimension=2)
        x = jnp.where(s_idx * s_tile + lane < s_total, x, 0.0)
    acc_ref[...] += x

    @pl.when(s_idx == pl.num_programs(1) - 1)
    def _():
        pooled = jnp.sum(acc_ref[...], axis=-1, keepdims=True) * inv_s
        h = jnp.sum(pooled * w1_ref[...][None], axis=1) + b1_ref[...]
        h = h * jax.nn.sigmoid(h)
        pre = jnp.sum(h[:, None, :] * w2t_ref[...][None], axis=-1,
                      keepdims=True) + b2_ref[...][None]
        scale_ref[...] = jax.nn.sigmoid(pre)


def _scale_kernel(x_ref, scale_ref, o_ref):
    """Pass 2: out = x * scale, broadcasting (1, C, 1) f32 scale over lanes."""
    o_ref[...] = (x_ref[...].astype(jnp.float32) * scale_ref[...]).astype(o_ref.dtype)


# ---------------------------------------------------------------------------
# Wrapper
# ---------------------------------------------------------------------------

@functools.partial(jax.jit, static_argnames=("force_two_pass",))
def se_block_pallas(x_nchw, w1, b1, w2, b2, *, force_two_pass=False):
    """x_nchw: (N, C, H, W). w1: (C, R), b1: (1, R), w2: (R, C), b2: (1, C).

    (w1, b1)/(w2, b2) are the 1x1 convs as dense matrices (conv weight^T) and
    biases; `force_two_pass` is a test hook for the streaming fallback."""
    N, C, H, W = x_nchw.shape
    S = H * W
    x_ncs = x_nchw.reshape(N, C, S)                  # zero-copy; S on lanes
    itemsize = x_ncs.dtype.itemsize

    # MLP params in f32, pre-arranged so C stays on the sublane axis in-kernel.
    w1f = w1.astype(jnp.float32)                     # (C, R)
    b1f = b1.reshape(1, -1).astype(jnp.float32)      # (1, R)
    w2tf = w2.T.astype(jnp.float32)                  # (C, R)
    b2f = b2.reshape(-1, 1).astype(jnp.float32)      # (C, 1)
    R = w1f.shape[1]

    budget = _vmem_budget_bytes()
    weight_bytes = 4 * (2 * C * R + R + C)
    block_bytes = C * S * itemsize
    # Fused path: 2x in + 2x out (double-buffered) + ~1x f32 working set + weights.
    fused_need = 4 * block_bytes + C * S * 4 + weight_bytes + (1 << 20)

    # ---- primary path: whole SE block fused in one pallas_call --------------
    if (not force_two_pass) and fused_need <= budget:
        out_ncs = pl.pallas_call(
            functools.partial(_se_fused_kernel, inv_s=1.0 / S),
            out_shape=jax.ShapeDtypeStruct((N, C, S), x_ncs.dtype),
            grid_spec=pltpu.PrefetchScalarGridSpec(
                num_scalar_prefetch=0,
                grid=(N,),
                in_specs=[
                    pl.BlockSpec((1, C, S), lambda n: (n, 0, 0)),
                    pl.BlockSpec((C, R), lambda n: (0, 0)),
                    pl.BlockSpec((1, R), lambda n: (0, 0)),
                    pl.BlockSpec((C, R), lambda n: (0, 0)),
                    pl.BlockSpec((C, 1), lambda n: (0, 0)),
                ],
                out_specs=pl.BlockSpec((1, C, S), lambda n: (n, 0, 0)),
            ),
            compiler_params=pltpu.CompilerParams(
                dimension_semantics=("parallel",),
                vmem_limit_bytes=int(budget)),
        )(x_ncs, w1f, b1f, w2tf, b2f)
        return out_ncs.reshape(N, C, H, W)

    # ---- fallback: two lane-dense streaming passes over x -------------------
    # Pass-1 footprint ~ 2*tile (double-buffered in) + tile_f32 scratch;
    # pass-2 ~ 4*tile (in+out double-buffered).  budget//8 per tile is safe.
    max_tile_bytes = budget // 8
    if force_two_pass:
        # Test hook: shrink the tile so the multi-step S accumulation runs.
        max_tile_bytes = min(max_tile_bytes, C * 128 * itemsize)
    s_tile = _pick_s_tile(S, C, itemsize, max_tile_bytes)
    n_s = pl.cdiv(S, s_tile)
    mask_tail = (S % s_tile) != 0
    grid = (N, n_s)

    # TODO(synk): on v7x with per-chip N == 1 both TensorCores only get work if
    # the reduction axis is also split (partial sums combined in the epilogue).

    scale_nc1 = pl.pallas_call(
        functools.partial(_pool_mlp_kernel, inv_s=1.0 / S, s_total=S,
                          s_tile=s_tile, mask_tail=mask_tail),
        out_shape=jax.ShapeDtypeStruct((N, C, 1), jnp.float32),
        grid_spec=pltpu.PrefetchScalarGridSpec(
            num_scalar_prefetch=0,
            grid=grid,
            in_specs=[
                pl.BlockSpec((1, C, s_tile), lambda n, s: (n, 0, s)),
                pl.BlockSpec((C, R), lambda n, s: (0, 0)),
                pl.BlockSpec((1, R), lambda n, s: (0, 0)),
                pl.BlockSpec((C, R), lambda n, s: (0, 0)),
                pl.BlockSpec((C, 1), lambda n, s: (0, 0)),
            ],
            out_specs=pl.BlockSpec((1, C, 1), lambda n, s: (n, 0, 0)),
            scratch_shapes=[pltpu.VMEM((1, C, s_tile), jnp.float32)],
        ),
        compiler_params=pltpu.CompilerParams(
            dimension_semantics=("parallel", "arbitrary"),
            vmem_limit_bytes=int(budget)),
    )(x_ncs, w1f, b1f, w2tf, b2f)

    out_ncs = pl.pallas_call(
        _scale_kernel,
        out_shape=jax.ShapeDtypeStruct((N, C, S), x_ncs.dtype),
        grid_spec=pltpu.PrefetchScalarGridSpec(
            num_scalar_prefetch=0,
            grid=grid,
            in_specs=[
                pl.BlockSpec((1, C, s_tile), lambda n, s: (n, 0, s)),
                pl.BlockSpec((1, C, 1), lambda n, s: (n, 0, 0)),
            ],
            out_specs=pl.BlockSpec((1, C, s_tile), lambda n, s: (n, 0, s)),
        ),
        compiler_params=pltpu.CompilerParams(
            dimension_semantics=("parallel", "parallel"),
            vmem_limit_bytes=int(budget)),
    )(x_ncs, scale_nc1)
    return out_ncs.reshape(N, C, H, W)


# ---------------------------------------------------------------------------
# Pure-JAX reference matching the PyTorch forward
# ---------------------------------------------------------------------------

def se_block_ref(x_nchw, w1, b1, w2, b2):
    xf = x_nchw.astype(jnp.float32)
    pooled = jnp.mean(xf, axis=(2, 3))                     # (N, C)
    h = pooled @ w1.astype(jnp.float32) + b1.astype(jnp.float32)
    h = h * jax.nn.sigmoid(h)                              # Swish
    s = jax.nn.sigmoid(h @ w2.astype(jnp.float32) + b2.astype(jnp.float32))
    return (xf * s[:, :, None, None]).astype(x_nchw.dtype)


if __name__ == "__main__":
    key = jax.random.PRNGKey(0)
    k_x, k_w1, k_b1, k_w2, k_b2 = jax.random.split(key, 5)

    # SEBlock(in_planes=4, reduced_dim=2); input x: (N=2, C=4, H=16, W=16)
    N, C, H, W, R = 2, 4, 16, 16, 2
    x = jax.random.normal(k_x, (N, C, H, W), dtype=jnp.float32)

    # Deterministic synthetic parameters (Conv2d 1x1 weights as dense: W^T).
    w1 = jax.random.normal(k_w1, (C, R), dtype=jnp.float32) * 0.5   # linear1.weight^T
    b1 = jax.random.normal(k_b1, (1, R), dtype=jnp.float32) * 0.1   # linear1.bias
    w2 = jax.random.normal(k_w2, (R, C), dtype=jnp.float32) * 0.5   # linear2.weight^T
    b2 = jax.random.normal(k_b2, (1, C), dtype=jnp.float32) * 0.1   # linear2.bias

    ref = se_block_ref(x, w1, b1, w2, b2)

    # Primary fused single-pass path.
    out = jax.block_until_ready(se_block_pallas(x, w1, b1, w2, b2))
    assert out.shape == x.shape and out.dtype == x.dtype
    assert jnp.allclose(out, ref, atol=1e-5, rtol=1e-5), "fused path mismatch"

    # Two-pass streaming fallback (forced small tiles so the S accumulation
    # and the MLP epilogue are exercised too).
    out2 = jax.block_until_ready(
        se_block_pallas(x, w1, b1, w2, b2, force_two_pass=True))
    assert jnp.allclose(out2, ref, atol=1e-5, rtol=1e-5), "two-pass path mismatch"

    print("KERNEL_OK")
</pallas_src>

<mosaic_0001>
module attributes {stable_mosaic.version = 11 : i64} {
  func.func @_se_fused_kernel(%arg0: i32, %arg1: memref<1x4x256xf32, #tpu.memory_space<vmem>>, %arg2: memref<4x2xf32, #tpu.memory_space<vmem>>, %arg3: memref<1x2xf32, #tpu.memory_space<vmem>>, %arg4: memref<4x2xf32, #tpu.memory_space<vmem>>, %arg5: memref<4x1xf32, #tpu.memory_space<vmem>>, %arg6: memref<1x4x256xf32, #tpu.memory_space<vmem>>) attributes {dimension_semantics = [#tpu.dimension_semantics<parallel>], iteration_bounds = array<i64: 2>, scalar_prefetch = 0 : i64, scratch_operands = 0 : i64, tpu.core_type = #tpu.core_type<tc>, window_params = [{transform_indices = @transform_0, window_bounds = array<i64: 1, 4, 256>}, {pipeline_mode = #tpu.pipeline_mode<synchronous>, transform_indices = @transform_1, window_bounds = array<i64: 4, 2>}, {pipeline_mode = #tpu.pipeline_mode<synchronous>, transform_indices = @transform_2, window_bounds = array<i64: 1, 2>}, {pipeline_mode = #tpu.pipeline_mode<synchronous>, transform_indices = @transform_3, window_bounds = array<i64: 4, 2>}, {pipeline_mode = #tpu.pipeline_mode<synchronous>, transform_indices = @transform_4, window_bounds = array<i64: 4, 1>}, {transform_indices = @transform_5, window_bounds = array<i64: 1, 4, 256>}]} {
    %c0 = arith.constant 0 : index
    %c0_0 = arith.constant 0 : index
    %c0_1 = arith.constant 0 : index
    %0 = vector.load %arg1[%c0, %c0_0, %c0_1] : memref<1x4x256xf32, #tpu.memory_space<vmem>>, vector<1x4x256xf32>
    %cst = arith.constant dense<0.000000e+00> : vector<1x4xf32>
    %1 = vector.multi_reduction <add>, %0, %cst [2] : vector<1x4x256xf32> to vector<1x4xf32>
    %2 = vector.shape_cast %1 : vector<1x4xf32> to vector<1x4x1xf32>
    %cst_2 = arith.constant 3.906250e-03 : f32
    %3 = vector.broadcast %cst_2 : f32 to vector<1x4x1xf32>
    %4 = arith.mulf %2, %3 : vector<1x4x1xf32>
    %c0_3 = arith.constant 0 : index
    %c0_4 = arith.constant 0 : index
    %5 = vector.load %arg2[%c0_3, %c0_4] : memref<4x2xf32, #tpu.memory_space<vmem>>, vector<4x2xf32>
    %6 = vector.shape_cast %5 : vector<4x2xf32> to vector<1x4x2xf32>
    %7 = vector.broadcast %4 : vector<1x4x1xf32> to vector<1x4x2xf32>
    %8 = arith.mulf %7, %6 : vector<1x4x2xf32>
    %cst_5 = arith.constant dense<0.000000e+00> : vector<1x2xf32>
    %9 = vector.multi_reduction <add>, %8, %cst_5 [1] : vector<1x4x2xf32> to vector<1x2xf32>
    %c0_6 = arith.constant 0 : index
    %c0_7 = arith.constant 0 : index
    %10 = vector.load %arg3[%c0_6, %c0_7] : memref<1x2xf32, #tpu.memory_space<vmem>>, vector<1x2xf32>
    %11 = arith.addf %9, %10 : vector<1x2xf32>
    %12 = arith.negf %11 : vector<1x2xf32>
    %13 = math.exp %12 : vector<1x2xf32>
    %cst_8 = arith.constant 1.000000e+00 : f32
    %14 = vector.broadcast %cst_8 : f32 to vector<1x2xf32>
    %15 = arith.addf %14, %13 : vector<1x2xf32>
    %16 = arith.divf %14, %15 : vector<1x2xf32>
    %17 = arith.mulf %11, %16 : vector<1x2xf32>
    %18 = vector.shape_cast %17 : vector<1x2xf32> to vector<1x1x2xf32>
    %c0_9 = arith.constant 0 : index
    %c0_10 = arith.constant 0 : index
    %19 = vector.load %arg4[%c0_9, %c0_10] : memref<4x2xf32, #tpu.memory_space<vmem>>, vector<4x2xf32>
    %20 = vector.shape_cast %19 : vector<4x2xf32> to vector<1x4x2xf32>
    %21 = vector.broadcast %18 : vector<1x1x2xf32> to vector<1x4x2xf32>
    %22 = arith.mulf %21, %20 : vector<1x4x2xf32>
    %cst_11 = arith.constant dense<0.000000e+00> : vector<1x4xf32>
    %23 = vector.multi_reduction <add>, %22, %cst_11 [2] : vector<1x4x2xf32> to vector<1x4xf32>
    %24 = vector.shape_cast %23 : vector<1x4xf32> to vector<1x4x1xf32>
    %c0_12 = arith.constant 0 : index
    %c0_13 = arith.constant 0 : index
    %25 = vector.load %arg5[%c0_12, %c0_13] : memref<4x1xf32, #tpu.memory_space<vmem>>, vector<4x1xf32>
    %26 = vector.shape_cast %25 : vector<4x1xf32> to vector<1x4x1xf32>
    %27 = arith.addf %24, %26 : vector<1x4x1xf32>
    %28 = arith.negf %27 : vector<1x4x1xf32>
    %29 = math.exp %28 : vector<1x4x1xf32>
    %cst_14 = arith.constant 1.000000e+00 : f32
    %30 = vector.broadcast %cst_14 : f32 to vector<1x4x1xf32>
    %31 = arith.addf %30, %29 : vector<1x4x1xf32>
    %32 = arith.divf %30, %31 : vector<1x4x1xf32>
    %33 = vector.broadcast %32 : vector<1x4x1xf32> to vector<1x4x256xf32>
    %34 = arith.mulf %0, %33 : vector<1x4x256xf32>
    %c0_15 = arith.constant 0 : index
    %c0_16 = arith.constant 0 : index
    %c0_17 = arith.constant 0 : index
    %35 = vector.load %arg6[%c0_15, %c0_16, %c0_17] : memref<1x4x256xf32, #tpu.memory_space<vmem>>, vector<1x4x256xf32>
    tpu.vector_store %arg6[%c0_15, %c0_16, %c0_17], %34 {strides = array<i32>} : memref<1x4x256xf32, #tpu.memory_space<vmem>>, vector<1x4x256xf32>,
    return
  }
  func.func @transform_0(%arg0: i32) -> (i32, i32, i32) {
    %c0_i32 = arith.constant 0 : i32
    %c0_i32_0 = arith.constant 0 : i32
    %c0_i32_1 = arith.constant 0 : i32
    return %arg0, %c0_i32, %c0_i32_0 : i32, i32, i32
  }
  func.func @transform_1(%arg0: i32) -> (i32, i32) {
    %c0_i32 = arith.constant 0 : i32
    %c0_i32_0 = arith.constant 0 : i32
    %c0_i32_1 = arith.constant 0 : i32
    return %c0_i32, %c0_i32_0 : i32, i32
  }
  func.func @transform_2(%arg0: i32) -> (i32, i32) {
    %c0_i32 = arith.constant 0 : i32
    %c0_i32_0 = arith.constant 0 : i32
    %c0_i32_1 = arith.constant 0 : i32
    return %c0_i32, %c0_i32_0 : i32, i32
  }
  func.func @transform_3(%arg0: i32) -> (i32, i32) {
    %c0_i32 = arith.constant 0 : i32
    %c0_i32_0 = arith.constant 0 : i32
    %c0_i32_1 = arith.constant 0 : i32
    return %c0_i32, %c0_i32_0 : i32, i32
  }
  func.func @transform_4(%arg0: i32) -> (i32, i32) {
    %c0_i32 = arith.constant 0 : i32
    %c0_i32_0 = arith.constant 0 : i32
    %c0_i32_1 = arith.constant 0 : i32
    return %c0_i32, %c0_i32_0 : i32, i32
  }
  func.func @transform_5(%arg0: i32) -> (i32, i32, i32) {
    %c0_i32 = arith.constant 0 : i32
    %c0_i32_0 = arith.constant 0 : i32
    %c0_i32_1 = arith.constant 0 : i32
    return %arg0, %c0_i32, %c0_i32_0 : i32, i32, i32
  }
}

</mosaic_0001>

<llo_original>
// kernel: se_block_pallas.1
$region0: #{se_block_pallas.1}
  #allocation0 [shape = 'u32[]', space=smem, size = 0x4, offset = 0x4, fixed_abs, tag = 'smem constant byte address 0x4 - core index']
  #allocation1 [shape = 'u32[144,128]{1,0:T(1,128)}', space=vmem, size = 0x12000, scoped, tag = 'internal scratch']
  %s0 = inlined_call_operand.vmem [shape: f32[2,4,256], index: 0, kind: input, shape index: {}]
  %s1 = inlined_call_operand.vmem [shape: f32[4,2], index: 1, kind: input, shape index: {}]
  %s2 = inlined_call_operand.vmem [shape: f32[1,2], index: 2, kind: input, shape index: {}]
  %s3 = inlined_call_operand.vmem [shape: f32[4,2], index: 3, kind: input, shape index: {}]
  %s4 = inlined_call_operand.vmem [shape: f32[4,1], index: 4, kind: input, shape index: {}]
  %s5 = inlined_call_operand.vmem [shape: f32[2,4,256], index: 5, kind: output, shape index: {}]
  %s6 = sld [smem:[#allocation0]]
  $region53: #{se_block_pallas.1} parent=0
    _
  %s8 = ssub.s32 1, %s6
  %s9 = scalar_select 0, %s8, %s6
  loop: start=0, step=1, limit=4
  $region2: #{se_block_pallas.1} parent=0 // loop_pre_header
    _
  $region3: #{se_block_pallas.1} parent=0 // loop_header
    %s11 = sphi 0, %s15
    %p12 = scmp.ge.s32.totalorder %s11, 4
    %s21 = sphi 0, %s23
    %s24 = sphi 0, %s21
    %s25 = sphi 0, %s24
    %s41 = sphi 0, %s25
    %s45 = sphi 0, %s45
    %s47 = sphi 0, %s45
    %s48 = sphi 0, %s47
    %s62 = sphi 0, %s48
    %s66 = sphi 0, %s66
    %s68 = sphi 0, %s66
    %s69 = sphi 0, %s68
    %s83 = sphi 0, %s69
    %s87 = sphi 0, %s87
    %s89 = sphi 0, %s87
    %s90 = sphi 0, %s89
    %s104 = sphi 0, %s90
    %s108 = sphi 0, %s108
    %s110 = sphi 0, %s108
    %s111 = sphi 0, %s110
    %s125 = sphi 0, %s111
    %s131 = sphi 0, %s133
    %s134 = sphi 0, %s131
    %s135 = sphi 0, %s134
    %s151 = sphi 0, %s135
  $region4: #{se_block_pallas.1} parent=0 // loop_header_branch
    %14 = sbr.rel (%p12) target = $region8
  $region5: #{se_block_pallas.1} parent=0 // loop_body
    %s16 = ssub.s32 %s11, 1
    %s17 = ssub.s32 %s11, 2
    %s18 = sadd.s32 %s11, 1
    %s19 = ssub.s32 %s11, %s18
    %p20 = scmp.eq.s32.totalorder %s19, 0
    %s22 = sadd.s32 %s21, 1
    %s23 = scalar_select %p20, %s21, %s22
    %p26 = pneg %p20
    %p27 = scmp.eq.s32.totalorder %s11, 1
    %p28 = por %p26, %p27
    %p29 = scmp.ne.s32.totalorder %s21, %s24
    %p30 = scmp.eq.s32.totalorder %s11, 0
    %p31 = por %p29, %p30
    %p32 = scmp.ne.s32.totalorder %s21, %s24
    %p33 = scmp.eq.s32.totalorder %s16, 1
    %p34 = por %p32, %p33
    %p35 = scmp.ne.s32.totalorder %s24, %s25
    %p36 = scmp.eq.s32.totalorder %s16, 0
    %p37 = por %p35, %p36
    %p38 = scmp.ne.s32.totalorder %s24, %s25
    %p39 = scmp.eq.s32.totalorder %s17, 1
    %p40 = por %p38, %p39
    %p42 = scmp.ne.s32.totalorder %s25, %s41
    %p43 = scmp.eq.s32.totalorder %s17, 0
    %p44 = por %p42, %p43
    %s46 = sadd.s32 %s45, 1
    %p49 = scmp.eq.s32.totalorder %s11, 1
    %p50 = scmp.ne.s32.totalorder %s45, %s47
    %p51 = scmp.eq.s32.totalorder %s11, 0
    %p52 = por %p50, %p51
    %p53 = scmp.ne.s32.totalorder %s45, %s47
    %p54 = scmp.eq.s32.totalorder %s16, 1
    %p55 = por %p53, %p54
    %p56 = scmp.ne.s32.totalorder %s47, %s48
    %p57 = scmp.eq.s32.totalorder %s16, 0
    %p58 = por %p56, %p57
    %p59 = scmp.ne.s32.totalorder %s47, %s48
    %p60 = scmp.eq.s32.totalorder %s17, 1
    %p61 = por %p59, %p60
    %p63 = scmp.ne.s32.totalorder %s48, %s62
    %p64 = scmp.eq.s32.totalorder %s17, 0
    %p65 = por %p63, %p64
    %s67 = sadd.s32 %s66, 1
    %p70 = scmp.eq.s32.totalorder %s11, 1
    %p71 = scmp.ne.s32.totalorder %s66, %s68
    %p72 = scmp.eq.s32.totalorder %s11, 0
    %p73 = por %p71, %p72
    %p74 = scmp.ne.s32.totalorder %s66, %s68
    %p75 = scmp.eq.s32.totalorder %s16, 1
    %p76 = por %p74, %p75
    %p77 = scmp.ne.s32.totalorder %s68, %s69
    %p78 = scmp.eq.s32.totalorder %s16, 0
    %p79 = por %p77, %p78
    %p80 = scmp.ne.s32.totalorder %s68, %s69
    %p81 = scmp.eq.s32.totalorder %s17, 1
    %p82 = por %p80, %p81
    %p84 = scmp.ne.s32.totalorder %s69, %s83
    %p85 = scmp.eq.s32.totalorder %s17, 0
    %p86 = por %p84, %p85
    %s88 = sadd.s32 %s87, 1
    %p91 = scmp.eq.s32.totalorder %s11, 1
    %p92 = scmp.ne.s32.totalorder %s87, %s89
    %p93 = scmp.eq.s32.totalorder %s11, 0
    %p94 = por %p92, %p93
    %p95 = scmp.ne.s32.totalorder %s87, %s89
    %p96 = scmp.eq.s32.totalorder %s16, 1
    %p97 = por %p95, %p96
    %p98 = scmp.ne.s32.totalorder %s89, %s90
    %p99 = scmp.eq.s32.totalorder %s16, 0
    %p100 = por %p98, %p99
    %p101 = scmp.ne.s32.totalorder %s89, %s90
    %p102 = scmp.eq.s32.totalorder %s17, 1
    %p103 = por %p101, %p102
    %p105 = scmp.ne.s32.totalorder %s90, %s104
    %p106 = scmp.eq.s32.totalorder %s17, 0
    %p107 = por %p105, %p106
    %s109 = sadd.s32 %s108, 1
    %p112 = scmp.eq.s32.totalorder %s11, 1
    %p113 = scmp.ne.s32.totalorder %s108, %s110
    %p114 = scmp.eq.s32.totalorder %s11, 0
    %p115 = por %p113, %p114
    %p116 = scmp.ne.s32.totalorder %s108, %s110
    %p117 = scmp.eq.s32.totalorder %s16, 1
    %p118 = por %p116, %p117
    %p119 = scmp.ne.s32.totalorder %s110, %s111
    %p120 = scmp.eq.s32.totalorder %s16, 0
    %p121 = por %p119, %p120
    %p122 = scmp.ne.s32.totalorder %s110, %s111
    %p123 = scmp.eq.s32.totalorder %s17, 1
    %p124 = por %p122, %p123
    %p126 = scmp.ne.s32.totalorder %s111, %s125
    %p127 = scmp.eq.s32.totalorder %s17, 0
    %p128 = por %p126, %p127
    %s129 = ssub.s32 %s11, %s18
    %p130 = scmp.eq.s32.totalorder %s129, 0
    %s132 = sadd.s32 %s131, 1
    %s133 = scalar_select %p130, %s131, %s132
    %p136 = pneg %p130
    %p137 = scmp.eq.s32.totalorder %s11, 1
    %p138 = por %p136, %p137
    %p139 = scmp.ne.s32.totalorder %s131, %s134
    %p140 = scmp.eq.s32.totalorder %s11, 0
    %p141 = por %p139, %p140
    %p142 = scmp.ne.s32.totalorder %s131, %s134
    %p143 = scmp.eq.s32.totalorder %s16, 1
    %p144 = por %p142, %p143
    %p145 = scmp.ne.s32.totalorder %s134, %s135
    %p146 = scmp.eq.s32.totalorder %s16, 0
    %p147 = por %p145, %p146
    %p148 = scmp.ne.s32.totalorder %s134, %s135
    %p149 = scmp.eq.s32.totalorder %s17, 1
    %p150 = por %p148, %p149
    %p152 = scmp.ne.s32.totalorder %s135, %s151
    %p153 = scmp.eq.s32.totalorder %s17, 0
    %p154 = por %p152, %p153
    %p155 = scmp.le.s32.totalorder 1, %s11
    %p156 = scmp.lt.s32.totalorder %s11, 3
    %p157 = pnand %p155, %p156
    %p158 = pneg %p157
    // Predicated region
    $region9: #{se_block_pallas.1} parent=5 // pred_check
      _
    $region10: #{se_block_pallas.1} parent=5 // pred_check_branch
      %160 = sbr.rel (%p157) target = $region12
    $region11: #{se_block_pallas.1} parent=5 // pred_region
      %s161 = ssub.s32 %s11, 1
      // Predicated region
      $region13: #{se_block_pallas.1} parent=11 // pred_check
        %p162 = pneg %p58
      $region14: #{se_block_pallas.1} parent=11 // pred_check_branch
        %164 = sbr.rel (%p162) target = $region16
      $region15: #{se_block_pallas.1} parent=11 // pred_region
        _
      $region16: #{se_block_pallas.1} parent=11 // pred_fallthru
        _
      // Predicated region
      $region17: #{se_block_pallas.1} parent=11 // pred_check
        %p165 = pneg %p79
      $region18: #{se_block_pallas.1} parent=11 // pred_check_branch
        %167 = sbr.rel (%p165) target = $region20
      $region19: #{se_block_pallas.1} parent=11 // pred_region
        _
      $region20: #{se_block_pallas.1} parent=11 // pred_fallthru
        _
      // Predicated region
      $region21: #{se_block_pallas.1} parent=11 // pred_check
        %p168 = pneg %p100
      $region22: #{se_block_pallas.1} parent=11 // pred_check_branch
        %170 = sbr.rel (%p168) target = $region24
      $region23: #{se_block_pallas.1} parent=11 // pred_region
        _
      $region24: #{se_block_pallas.1} parent=11 // pred_fallthru
        _
      // Predicated region
      $region25: #{se_block_pallas.1} parent=11 // pred_check
        %p171 = pneg %p121
      $region26: #{se_block_pallas.1} parent=11 // pred_check_branch
        %173 = sbr.rel (%p171) target = $region28
      $region27: #{se_block_pallas.1} parent=11 // pred_region
        _
      $region28: #{se_block_pallas.1} parent=11 // pred_fallthru
        _
    $region12: #{se_block_pallas.1} parent=5 // pred_fallthru
      _
    %p174 = scmp.lt.s32.totalorder %s11, 2
    // Predicated region
    $region29: #{se_block_pallas.1} parent=5 // pred_check
      %p175 = pneg %p174
    $region30: #{se_block_pallas.1} parent=5 // pred_check_branch
      %177 = sbr.rel (%p175) target = $region32
    $region31: #{se_block_pallas.1} parent=5 // pred_region
      // Predicated region
      $region33: #{se_block_pallas.1} parent=31 // pred_check
        %p178 = pneg %p31
      $region34: #{se_block_pallas.1} parent=31 // pred_check_branch
        %180 = sbr.rel (%p178) target = $region36
      $region35: #{se_block_pallas.1} parent=31 // pred_region
        %p181 = scmp.lt.s32.totalorder %s11, 1
        %s182 = scalar_select %p181, %s11, 1
        %s183 = smul.addr %s182, 2
        %s184 = smul.addr %s183, 4
        %s185 = scalar_lea.vmem %s0, %s184
      $region36: #{se_block_pallas.1} parent=31 // pred_fallthru
        _
    $region32: #{se_block_pallas.1} parent=5 // pred_fallthru
      _
    %p186 = scmp.le.s32.totalorder 1, %s11
    %p187 = scmp.lt.s32.totalorder %s11, 3
    %p188 = pnand %p186, %p187
    %p189 = pneg %p188
    // Predicated region
    $region37: #{se_block_pallas.1} parent=5 // pred_check
      _
    $region38: #{se_block_pallas.1} parent=5 // pred_check_branch
      %191 = sbr.rel (%p188) target = $region40
    $region39: #{se_block_pallas.1} parent=5 // pred_region
      %s192 = ssub.s32 %s11, 1
      %p193 = scmp.lt.s32.totalorder %s16, 1
      %s194 = scalar_select %p193, %s16, 1
      %s195 = smul.addr %s194, 2
      %s196 = smul.addr %s195, 4
      %s197 = scalar_lea.vmem %s0, %s196
      %p198 = pneg %p37
      %p199 = pneg %p34
      %p200 = pneg %p58
      %p201 = pneg %p55
      %p202 = pneg %p79
      %p203 = pneg %p76
      %p204 = pneg %p100
      %p205 = pneg %p97
      %p206 = pneg %p121
      %p207 = pneg %p118
      %p208 = pneg %p147
      %p209 = pneg %p144
      %p210 = scmp.lt.s32.totalorder %s16, 1
      %s211 = scalar_select %p210, %s16, 1
      %s212 = smul.addr %s211, 2
      %s213 = smul.addr %s212, 4
      %s214 = scalar_lea.vmem %s5, %s213
      %p215 = scmp.lt.s32.totalorder %s16, 1
      %s216 = scalar_select %p215, %s16, 1
      %s217 = smul.addr %s216, 2
      %s218 = smul.addr %s217, 4
      %s219 = scalar_lea.vmem %s0, %s218
      %p220 = scmp.lt.s32.totalorder %s16, 1
      %s221 = scalar_select %p220, %s16, 1
      %s222 = smul.addr %s221, 2
      %s223 = smul.addr %s222, 4
      %s224 = scalar_lea.vmem %s5, %s223
      %v225 = vld [vmem:[%s219] sm:$0xff]
      %v227 = vcombine.high %v225, %v225
      %vm229 = vcmask 1043456
      %v230 = vsel %vm229, %v225, 0.0
      %v231 = vsel %vm229, %v227, 0.0
      %v232 = vadd.f32 %v230, %v231
      %233 = vadd.xlane.f32.xlu0 %v232
      %v234 = vpop.xlane.xlu0 %233
      %v235 = vmul.f32 %v234, 0.00390625
      %v236 = vld [vmem:[%s1] sm:$0xf]
      %v237 = vmul.f32 %v235, %v236
      %vm238 = vcmask 11264
      %v239 = vsel %vm238, %v237, 0.0
      %v240 = vrot.slane %v239, 4
      %v241 = vadd.f32 %v239, %v240
      %v242 = vrot.slane %v241, 2
      %v243 = vadd.f32 %v241, %v242
      %v244 = vrot.slane %v243, 1
      %v245 = vadd.f32 %v243, %v244
      %v246 = vld [vmem:[%s2] sm:$0x1]
      %v247 = vadd.f32 %v245, %v246
      %v248 = vxor.u32 %v247, 2147483648
      %v249 = vmul.f32 %v248, 1.442695
      %v250 = vpow.pop %v249
      %v251 = vadd.f32 %v250, 1.0
      %v252 = vrcp.pop %v251
      %v253 = vmul.f32 1.0, %v252
      %v254 = vmul.f32 %v247, %v253
      %v255 = vld [vmem:[%s3] sm:$0xf]
      %v256 = vlaneseq
      %v257 = vshrl.u32 %v256, 7
      %v258 = vsub.s32 0, %v257
      %v259 = vrot.slane %v254, %v258
      %v260 = vmul.f32 %v259, %v255
      %v261 = vsel %vm238, %v260, 0.0
      %262 = vadd.xlane.f32.xlu0 %v261
      %v263 = vpop.xlane.xlu0 %262
      %v264 = vld [vmem:[%s4] sm:$0xf]
      %v265 = vadd.f32 %v263, %v264
      %v266 = vxor.u32 %v265, 2147483648
      %v267 = vmul.f32 %v266, 1.442695
      %v268 = vpow.pop %v267
      %v269 = vadd.f32 %v268, 1.0
      %v270 = vrcp.pop %v269
      %v271 = vmul.f32 1.0, %v270
      %273 = vset.pattern.permute.xlu0 0
      %274 = vperm.xlu0 %273, %v271
      %v275 = vpop.permute.xlu0 %274
      %v277 = vunpack.c.l.s4 839922192
      %v278 = vunpack.c.0.s8 %v277
      %v279 = vlaneseq
      %v280 = vshrl.u32 %v279, 7
      %v281 = vsub.s32 %v278, %v280
      %v282 = vrot.slane %v275, %v281
      %v284 = vmul.f32 %v225, %v282
      %285 = vst [vmem:[%s224] sm:$0xff] %v284
      %p286 = scmp.lt.s32.totalorder %s16, 1
      %s287 = scalar_select %p286, %s16, 1
      %s288 = smul.addr %s287, 2
      %s289 = smul.addr %s288, 4
      %s290 = scalar_lea.vmem %s5, %s289
      // Predicated region
      $region41: #{se_block_pallas.1} parent=39 // pred_check
        %p291 = pneg %p144
      $region42: #{se_block_pallas.1} parent=39 // pred_check_branch
        %293 = sbr.rel (%p291) target = $region44
      $region43: #{se_block_pallas.1} parent=39 // pred_region
        _
      $region44: #{se_block_pallas.1} parent=39 // pred_fallthru
        _
    $region40: #{se_block_pallas.1} parent=5 // pred_fallthru
      _
    %p294 = scmp.le.s32.totalorder 2, %s11
    // Predicated region
    $region45: #{se_block_pallas.1} parent=5 // pred_check
      %p295 = pneg %p294
    $region46: #{se_block_pallas.1} parent=5 // pred_check_branch
      %297 = sbr.rel (%p295) target = $region48
    $region47: #{se_block_pallas.1} parent=5 // pred_region
      %s298 = ssub.s32 %s11, 2
      // Predicated region
      $region49: #{se_block_pallas.1} parent=47 // pred_check
        %p299 = pneg %p150
      $region50: #{se_block_pallas.1} parent=47 // pred_check_branch
        %301 = sbr.rel (%p299) target = $region52
      $region51: #{se_block_pallas.1} parent=47 // pred_region
        %p302 = scmp.lt.s32.totalorder %s17, 1
        %s303 = scalar_select %p302, %s17, 1
        %s304 = smul.addr %s303, 2
        %s305 = smul.addr %s304, 4
        %s306 = scalar_lea.vmem %s5, %s305
      $region52: #{se_block_pallas.1} parent=47 // pred_fallthru
        _
    $region48: #{se_block_pallas.1} parent=5 // pred_fallthru
      _
  $region6: #{se_block_pallas.1} parent=0 // loop_footer
    %s15 = sadd.s32 1, %s11
  $region7: #{se_block_pallas.1} parent=0 // loop_footer_branch
    %10 = sbr.rel target = $region3
  $region8: #{se_block_pallas.1} parent=0 // loop_exit
    _

</llo_original>
